<compile_context>
chip_gen: v7x
topology: tpu7x:2x2x1
jax: 0.10.0
libtpu: 0.0.40
codegen_flags: <defaults>
</compile_context>

<pallas_src>
import jax
import jax.numpy as jnp
from jax.experimental import pallas as pl
from jax.experimental.pallas import tpu as pltpu


def _se_block_kernel(x_ref, w1_ref, b1_ref, w2_ref, b2_ref, o_ref):
    # fc1 + ReLU: cast the activation down to the weight dtype (never upcast
    # the VMEM-resident weights); f32 accumulation on the MXU.
    se = jnp.dot(x_ref[...].astype(w1_ref.dtype), w1_ref[...],
                 preferred_element_type=jnp.float32)
    se = jnp.maximum(se + b1_ref[...].astype(jnp.float32), 0.0)

    # fc2: cast the small (tb, H) activation down to w2's dtype; f32 accumulate.
    se = jnp.dot(se.astype(w2_ref.dtype), w2_ref[...],
                 preferred_element_type=jnp.float32)

    # sigmoid(z) = 1 / (1 + exp(-z)): exp and reciprocal both stay on the EUP.
    z = se + b2_ref[...].astype(jnp.float32)
    se = pl.reciprocal(1.0 + jnp.exp(-z), approx=True)

    # Scale the input: a single convert (se -> x dtype), multiply in x's dtype.
    o_ref[...] = (x_ref[...] * se.astype(x_ref.dtype)).astype(o_ref.dtype)


def _round_up(n, m):
    return ((n + m - 1) // m) * m


def se_block(x, w1, b1, w2, b2, *, block_batch=2048):
    """SE block forward. x:(B,C), w1:(C,H), b1:(1,H), w2:(H,C), b2:(1,C) -> (B,C)."""
    B, C = x.shape
    Cin, H = w1.shape
    assert Cin == C and w2.shape == (H, C) and b1.shape == (1, H) and b2.shape == (1, C)

    # Fallback only: pad C to a 128 multiple for lane-dense stores. This path
    # is dead (no extra HBM traffic) whenever C % 128 == 0.
    c_pad = (-C) % 128
    if c_pad:
        x = jnp.pad(x, ((0, 0), (0, c_pad)))
        w1 = jnp.pad(w1, ((0, c_pad), (0, 0)))
        w2 = jnp.pad(w2, ((0, 0), (0, c_pad)))
        b2 = jnp.pad(b2, ((0, 0), (0, c_pad)))
    Cp = C + c_pad

    itemsize = x.dtype.itemsize
    weight_bytes = sum(int(a.size) * a.dtype.itemsize for a in (w1, b1, w2, b2))

    # --- Batch tile: target a ~4 MiB x tile, multiple of 16 rows. ---
    tb = max(16, min(block_batch, (4 * 1024 * 1024) // (Cp * itemsize)))
    tb = min(tb, _round_up(B, 16))      # don't massively over-tile tiny batches
    tb = _round_up(tb, 16)

    # Keep the pipeline footprint (double-buffered x/out tiles, f32
    # intermediates, weights at 2x) under a conservative cross-generation
    # budget, and tell the compiler the budget explicitly.
    def footprint(t):
        return (4 * t * Cp * itemsize        # 2x in + 2x out tiles
                + 3 * t * Cp * 4             # f32 intermediates in the body
                + 2 * weight_bytes           # resident weights, budgeted at 2x
                + (2 << 20))                 # headroom
    while footprint(tb) > (48 << 20) and tb > 16:
        tb = max(16, _round_up(tb // 2, 16))

    # v7x megacore: make sure there are >= 2 grid steps to shard when B allows.
    if B > 16 and pl.cdiv(B, tb) < 2:
        tb = max(16, _round_up(pl.cdiv(B, 2), 16))

    grid = (pl.cdiv(B, tb),)
    vmem_limit = int(min(max(footprint(tb), 32 << 20), 64 << 20))

    cost = pl.CostEstimate(
        flops=4 * B * Cp * H,                        # two matmuls
        transcendentals=2 * B * Cp,                  # exp + reciprocal
        bytes_accessed=2 * B * Cp * itemsize + weight_bytes,
    )

    out = pl.pallas_call(
        _se_block_kernel,
        out_shape=jax.ShapeDtypeStruct((B, Cp), x.dtype),
        grid=grid,
        in_specs=[
            pl.BlockSpec((tb, Cp), lambda i: (i, 0)),   # x tile (pipelined)
            pl.BlockSpec((Cp, H), lambda i: (0, 0)),    # w1 (VMEM-resident)
            pl.BlockSpec((1, H), lambda i: (0, 0)),     # b1
            pl.BlockSpec((H, Cp), lambda i: (0, 0)),    # w2
            pl.BlockSpec((1, Cp), lambda i: (0, 0)),    # b2
        ],
        out_specs=pl.BlockSpec((tb, Cp), lambda i: (i, 0)),
        compiler_params=pltpu.CompilerParams(
            dimension_semantics=("parallel",),
            vmem_limit_bytes=vmem_limit,
        ),
        cost_estimate=cost,
    )(x, w1, b1, w2, b2)

    return out[:, :C] if c_pad else out


def init_params(key, num_classes, reduction=16, dtype=jnp.float32):
    """Deterministic synthetic parameters with nn.Linear-like shapes."""
    hidden = num_classes // reduction
    k1, k2, k3, k4 = jax.random.split(key, 4)
    # torch.nn.Linear stores weight as (out, in); we keep the transposed
    # (in, out) layout for the kernel's row-major matmuls.
    w1 = jax.random.normal(k1, (num_classes, hidden), dtype) * 0.05
    b1 = jax.random.normal(k2, (1, hidden), dtype) * 0.05
    w2 = jax.random.normal(k3, (hidden, num_classes), dtype) * 0.05
    b2 = jax.random.normal(k4, (1, num_classes), dtype) * 0.05
    return w1, b1, w2, b2


def se_block_ref(x, w1, b1, w2, b2):
    """Pure-JAX reference for correctness checking."""
    se = jnp.maximum(x @ w1 + b1, 0.0)
    se = jax.nn.sigmoid(se @ w2 + b2)
    return x * se


if __name__ == "__main__":
    key = jax.random.PRNGKey(0)
    batch, num_classes, reduction = 8, 256, 16

    kx, kp = jax.random.split(key)
    x = jax.random.normal(kx, (batch, num_classes), jnp.float32)
    w1, b1, w2, b2 = init_params(kp, num_classes, reduction)

    out = jax.block_until_ready(se_block(x, w1, b1, w2, b2))
    ref = se_block_ref(x, w1, b1, w2, b2)
    assert out.shape == (batch, num_classes)
    # Tolerance accounts for the approximate-reciprocal sigmoid.
    assert jnp.allclose(out, ref, atol=5e-3, rtol=5e-3)

    # Tail-masking path: batch not a multiple of the tile, no padding/slicing.
    x2 = jax.random.normal(jax.random.PRNGKey(1), (37, num_classes), jnp.float32)
    out2 = jax.block_until_ready(se_block(x2, w1, b1, w2, b2))
    assert jnp.allclose(out2, se_block_ref(x2, w1, b1, w2, b2), atol=5e-3, rtol=5e-3)

    # bf16 in/out path (halves HBM traffic on this BW-bound kernel); the
    # kernel still accumulates in f32 and computes the sigmoid in f32.
    xb = jax.random.normal(jax.random.PRNGKey(2), (24, num_classes), jnp.float32)
    params_bf16 = tuple(a.astype(jnp.bfloat16) for a in (w1, b1, w2, b2))
    out3 = jax.block_until_ready(se_block(xb.astype(jnp.bfloat16), *params_bf16))
    ref3 = se_block_ref(xb, *(a.astype(jnp.float32) for a in params_bf16))
    assert out3.dtype == jnp.bfloat16
    assert jnp.allclose(out3.astype(jnp.float32), ref3, atol=3e-2, rtol=3e-2)

    print("KERNEL_OK")
</pallas_src>

<mosaic_0001>
module attributes {stable_mosaic.version = 11 : i64} {
  func.func @_se_block_kernel(%arg0: i32, %arg1: memref<16x256xf32, #tpu.memory_space<vmem>>, %arg2: memref<256x16xf32, #tpu.memory_space<vmem>>, %arg3: memref<1x16xf32, #tpu.memory_space<vmem>>, %arg4: memref<16x256xf32, #tpu.memory_space<vmem>>, %arg5: memref<1x256xf32, #tpu.memory_space<vmem>>, %arg6: memref<16x256xf32, #tpu.memory_space<vmem>>) attributes {dimension_semantics = [#tpu.dimension_semantics<parallel>], iteration_bounds = array<i64: 1>, scalar_prefetch = 0 : i64, scratch_operands = 0 : i64, tpu.core_type = #tpu.core_type<tc>, window_params = [{transform_indices = @transform_0, window_bounds = array<i64: 16, 256>}, {pipeline_mode = #tpu.pipeline_mode<synchronous>, transform_indices = @transform_1, window_bounds = array<i64: 256, 16>}, {pipeline_mode = #tpu.pipeline_mode<synchronous>, transform_indices = @transform_2, window_bounds = array<i64: 1, 16>}, {pipeline_mode = #tpu.pipeline_mode<synchronous>, transform_indices = @transform_3, window_bounds = array<i64: 16, 256>}, {pipeline_mode = #tpu.pipeline_mode<synchronous>, transform_indices = @transform_4, window_bounds = array<i64: 1, 256>}, {transform_indices = @transform_5, window_bounds = array<i64: 16, 256>}]} {
    %c0 = arith.constant 0 : index
    %c0_0 = arith.constant 0 : index
    %0 = vector.load %arg1[%c0, %c0_0] : memref<16x256xf32, #tpu.memory_space<vmem>>, vector<16x256xf32>
    %c0_1 = arith.constant 0 : index
    %c0_2 = arith.constant 0 : index
    %1 = vector.load %arg2[%c0_1, %c0_2] : memref<256x16xf32, #tpu.memory_space<vmem>>, vector<256x16xf32>
    %cst = arith.constant dense<0.000000e+00> : vector<16x16xf32>
    %2 = tpu.matmul %0, %1, %cst {dimension_numbers = #tpu.dot_dimension_numbers<[1], [0], [0], [1], [0, 0, 1, 1], [], []>} : vector<16x256xf32>, vector<256x16xf32>, vector<16x16xf32> -> vector<16x16xf32>
    %c0_3 = arith.constant 0 : index
    %c0_4 = arith.constant 0 : index
    %3 = vector.load %arg3[%c0_3, %c0_4] : memref<1x16xf32, #tpu.memory_space<vmem>>, vector<1x16xf32>
    %4 = vector.broadcast %3 : vector<1x16xf32> to vector<16x16xf32>
    %5 = arith.addf %2, %4 : vector<16x16xf32>
    %cst_5 = arith.constant 0.000000e+00 : f32
    %6 = vector.broadcast %cst_5 : f32 to vector<16x16xf32>
    %7 = arith.maximumf %5, %6 : vector<16x16xf32>
    %c0_6 = arith.constant 0 : index
    %c0_7 = arith.constant 0 : index
    %8 = vector.load %arg4[%c0_6, %c0_7] : memref<16x256xf32, #tpu.memory_space<vmem>>, vector<16x256xf32>
    %cst_8 = arith.constant dense<0.000000e+00> : vector<16x256xf32>
    %9 = tpu.matmul %7, %8, %cst_8 {dimension_numbers = #tpu.dot_dimension_numbers<[1], [0], [0], [1], [0, 0, 1, 1], [], []>} : vector<16x16xf32>, vector<16x256xf32>, vector<16x256xf32> -> vector<16x256xf32>
    %c0_9 = arith.constant 0 : index
    %c0_10 = arith.constant 0 : index
    %10 = vector.load %arg5[%c0_9, %c0_10] : memref<1x256xf32, #tpu.memory_space<vmem>>, vector<1x256xf32>
    %11 = vector.broadcast %10 : vector<1x256xf32> to vector<16x256xf32>
    %12 = arith.addf %9, %11 : vector<16x256xf32>
    %cst_11 = arith.constant 0.000000e+00 : f32
    %13 = vector.broadcast %cst_11 : f32 to vector<16x256xf32>
    %14 = arith.subf %13, %12 : vector<16x256xf32>
    %15 = math.exp %14 : vector<16x256xf32>
    %cst_12 = arith.constant 1.000000e+00 : f32
    %16 = vector.broadcast %cst_12 : f32 to vector<16x256xf32>
    %17 = arith.addf %16, %15 : vector<16x256xf32>
    %18 = tpu.reciprocal %17 {approx = true} : vector<16x256xf32> -> vector<16x256xf32>
    %c0_13 = arith.constant 0 : index
    %c0_14 = arith.constant 0 : index
    %19 = vector.load %arg1[%c0_13, %c0_14] : memref<16x256xf32, #tpu.memory_space<vmem>>, vector<16x256xf32>
    %20 = arith.mulf %19, %18 : vector<16x256xf32>
    %c0_15 = arith.constant 0 : index
    %c0_16 = arith.constant 0 : index
    %21 = vector.load %arg6[%c0_15, %c0_16] : memref<16x256xf32, #tpu.memory_space<vmem>>, vector<16x256xf32>
    tpu.vector_store %arg6[%c0_15, %c0_16], %20 {strides = array<i32>} : memref<16x256xf32, #tpu.memory_space<vmem>>, vector<16x256xf32>,
    return
  }
  func.func @transform_0(%arg0: i32) -> (i32, i32) {
    %c0_i32 = arith.constant 0 : i32
    %c0_i32_0 = arith.constant 0 : i32
    return %arg0, %c0_i32 : i32, i32
  }
  func.func @transform_1(%arg0: i32) -> (i32, i32) {
    %c0_i32 = arith.constant 0 : i32
    %c0_i32_0 = arith.constant 0 : i32
    %c0_i32_1 = arith.constant 0 : i32
    return %c0_i32, %c0_i32_0 : i32, i32
  }
  func.func @transform_2(%arg0: i32) -> (i32, i32) {
    %c0_i32 = arith.constant 0 : i32
    %c0_i32_0 = arith.constant 0 : i32
    %c0_i32_1 = arith.constant 0 : i32
    return %c0_i32, %c0_i32_0 : i32, i32
  }
  func.func @transform_3(%arg0: i32) -> (i32, i32) {
    %c0_i32 = arith.constant 0 : i32
    %c0_i32_0 = arith.constant 0 : i32
    %c0_i32_1 = arith.constant 0 : i32
    return %c0_i32, %c0_i32_0 : i32, i32
  }
  func.func @transform_4(%arg0: i32) -> (i32, i32) {
    %c0_i32 = arith.constant 0 : i32
    %c0_i32_0 = arith.constant 0 : i32
    %c0_i32_1 = arith.constant 0 : i32
    return %c0_i32, %c0_i32_0 : i32, i32
  }
  func.func @transform_5(%arg0: i32) -> (i32, i32) {
    %c0_i32 = arith.constant 0 : i32
    %c0_i32_0 = arith.constant 0 : i32
    return %arg0, %c0_i32 : i32, i32
  }
}

</mosaic_0001>

<llo_original>
// kernel: tpu_custom_call.1
$region0: #{tpu_custom_call.1}
  #allocation0 [shape = 'u32[]', space=smem, size = 0x4, offset = 0x4, fixed_abs, tag = 'smem constant byte address 0x4 - core index']
  #allocation1 [shape = 'u32[144,128]{1,0:T(1,128)}', space=vmem, size = 0x12000, scoped, tag = 'internal scratch']
  %s0 = inlined_call_operand.vmem [shape: f32[8,256], index: 0, kind: input, shape index: {}]
  %s1 = inlined_call_operand.vmem [shape: f32[256,16], index: 1, kind: input, shape index: {}]
  %s2 = inlined_call_operand.vmem [shape: f32[1,16], index: 2, kind: input, shape index: {}]
  %s3 = inlined_call_operand.vmem [shape: f32[16,256], index: 3, kind: input, shape index: {}]
  %s4 = inlined_call_operand.vmem [shape: f32[1,256], index: 4, kind: input, shape index: {}]
  %s5 = inlined_call_operand.hbm [shape: f32[8,256], index: 5, kind: output, shape index: {}]
  %s6 = sld [smem:[#allocation0]]
  $region30: #{tpu_custom_call.1} parent=0
    _
  %s8 = ssub.s32 1, %s6
  %s9 = scalar_select 0, %s8, %s6
  $region1: #{tpu_custom_call.1} parent=0
    #allocation2 [shape = 'u8[16384]{0}', space=vmem, size = 0x4000, scoped, tag = 'output window, operand 0, single buffered']
    #allocation3 [shape = 's32[1]{0}', space=sflag, size = 0x4, scoped, tag = 'scoped memory for tpu_custom_call.1']
    %10 = vsyncpa [#allocation3], 0
    // Predicated region
    $region2: #{tpu_custom_call.1} parent=1 // pred_check
      _
    $region3: #{tpu_custom_call.1} parent=1 // pred_check_branch
      %12 = sbr.rel (0) target = $region5
    $region4: #{tpu_custom_call.1} parent=1 // pred_region
      _
    $region5: #{tpu_custom_call.1} parent=1 // pred_fallthru
      _
    // Predicated region
    $region6: #{tpu_custom_call.1} parent=1 // pred_check
      _
    $region7: #{tpu_custom_call.1} parent=1 // pred_check_branch
      %14 = sbr.rel (0) target = $region9
    $region8: #{tpu_custom_call.1} parent=1 // pred_region
      _
    $region9: #{tpu_custom_call.1} parent=1 // pred_fallthru
      _
    // Predicated region
    $region10: #{tpu_custom_call.1} parent=1 // pred_check
      _
    $region11: #{tpu_custom_call.1} parent=1 // pred_check_branch
      %16 = sbr.rel (0) target = $region13
    $region12: #{tpu_custom_call.1} parent=1 // pred_region
      _
    $region13: #{tpu_custom_call.1} parent=1 // pred_fallthru
      _
    // Predicated region
    $region14: #{tpu_custom_call.1} parent=1 // pred_check
      _
    $region15: #{tpu_custom_call.1} parent=1 // pred_check_branch
      %18 = sbr.rel (0) target = $region17
    $region16: #{tpu_custom_call.1} parent=1 // pred_region
      _
    $region17: #{tpu_custom_call.1} parent=1 // pred_fallthru
      _
    // Predicated region
    $region18: #{tpu_custom_call.1} parent=1 // pred_check
      _
    $region19: #{tpu_custom_call.1} parent=1 // pred_check_branch
      %20 = sbr.rel (0) target = $region21
    $region20: #{tpu_custom_call.1} parent=1 // pred_region
      _
    $region21: #{tpu_custom_call.1} parent=1 // pred_fallthru
      _
    %v21 = vld [vmem:[%s0] sm:$0xff]
    %v22 = vld [vmem:[%s0 + $0x8] sm:$0xff]
    %v23 = vld [vmem:[%s0 + $0x10] sm:$0xff]
    %v24 = vld [vmem:[%s0 + $0x18] sm:$0xff]
    %v25 = vld [vmem:[%s1] sm:$0xff]
    %v26 = vld [vmem:[%s1 + $0x8] sm:$0xff]
    %v27 = vld [vmem:[%s1 + $0x10] sm:$0xff]
    %v28 = vld [vmem:[%s1 + $0x18] sm:$0xff]
    %v29 = vld [vmem:[%s1 + $0x20] sm:$0xff]
    %v30 = vld [vmem:[%s1 + $0x28] sm:$0xff]
    %v31 = vld [vmem:[%s1 + $0x30] sm:$0xff]
    %v32 = vld [vmem:[%s1 + $0x38] sm:$0xff]
    %v33 = vld [vmem:[%s1 + $0x40] sm:$0xff]
    %v34 = vld [vmem:[%s1 + $0x48] sm:$0xff]
    %v35 = vld [vmem:[%s1 + $0x50] sm:$0xff]
    %v36 = vld [vmem:[%s1 + $0x58] sm:$0xff]
    %v37 = vld [vmem:[%s1 + $0x60] sm:$0xff]
    %v38 = vld [vmem:[%s1 + $0x68] sm:$0xff]
    %v39 = vld [vmem:[%s1 + $0x70] sm:$0xff]
    %v40 = vld [vmem:[%s1 + $0x78] sm:$0xff]
    %v41 = vld [vmem:[%s1 + $0x80] sm:$0xff]
    %v42 = vld [vmem:[%s1 + $0x88] sm:$0xff]
    %v43 = vld [vmem:[%s1 + $0x90] sm:$0xff]
    %v44 = vld [vmem:[%s1 + $0x98] sm:$0xff]
    %v45 = vld [vmem:[%s1 + $0xa0] sm:$0xff]
    %v46 = vld [vmem:[%s1 + $0xa8] sm:$0xff]
    %v47 = vld [vmem:[%s1 + $0xb0] sm:$0xff]
    %v48 = vld [vmem:[%s1 + $0xb8] sm:$0xff]
    %v49 = vld [vmem:[%s1 + $0xc0] sm:$0xff]
    %v50 = vld [vmem:[%s1 + $0xc8] sm:$0xff]
    %v51 = vld [vmem:[%s1 + $0xd0] sm:$0xff]
    %v52 = vld [vmem:[%s1 + $0xd8] sm:$0xff]
    %v53 = vld [vmem:[%s1 + $0xe0] sm:$0xff]
    %v54 = vld [vmem:[%s1 + $0xe8] sm:$0xff]
    %v55 = vld [vmem:[%s1 + $0xf0] sm:$0xff]
    %v56 = vld [vmem:[%s1 + $0xf8] sm:$0xff]
    %v57 = vld [vmem:[%s2] sm:$0x1]
    %v59 = vlaneseq
    %v60 = vshrl.u32 %v59, 7
    %v61 = vsub.s32 0, %v60
    %v62 = vrot.slane %v57, %v61
    %64 = vmatprep.subr.mxu0 0.0
    %65 = vmatpush1.msra.mxu0 %v25
    %66 = vmatprep.subr.mxu0 0.0
    %67 = vmatpush1.msra.mxu0 %v26
    %68 = vmatprep.subr.mxu0 0.0
    %69 = vmatpush1.msra.mxu0 %v27
    %70 = vmatprep.subr.mxu0 0.0
    %71 = vmatpush1.msra.mxu0 %v28
    %72 = vmatprep.subr.mxu0 0.0
    %73 = vmatpush1.msra.mxu0 %v29
    %74 = vmatprep.subr.mxu0 0.0
    %75 = vmatpush1.msra.mxu0 %v30
    %76 = vmatprep.subr.mxu0 0.0
    %77 = vmatpush1.msra.mxu0 %v31
    %78 = vmatprep.subr.mxu0 0.0
    %79 = vmatpush1.msra.mxu0 %v32
    %80 = vmatprep.subr.mxu0 0.0
    %81 = vmatpush1.msra.mxu0 %v33
    %82 = vmatprep.subr.mxu0 0.0
    %83 = vmatpush1.msra.mxu0 %v34
    %84 = vmatprep.subr.mxu0 0.0
    %85 = vmatpush1.msra.mxu0 %v35
    %86 = vmatprep.subr.mxu0 0.0
    %87 = vmatpush1.msra.mxu0 %v36
    %88 = vmatprep.subr.mxu0 0.0
    %89 = vmatpush1.msra.mxu0 %v37
    %90 = vmatprep.subr.mxu0 0.0
    %91 = vmatpush1.msra.mxu0 %v38
    %92 = vmatprep.subr.mxu0 0.0
    %93 = vmatpush1.msra.mxu0 %v39
    %94 = vmatprep.subr.mxu0 0.0
    %95 = vmatpush1.msra.mxu0 %v40
    %96 = vmatprep.subr.mxu0 0.0
    %97 = vmatpush1.msra.mxu0 %v41
    %98 = vmatprep.subr.mxu0 0.0
    %99 = vmatpush1.msra.mxu0 %v42
    %100 = vmatprep.subr.mxu0 0.0
    %101 = vmatpush1.msra.mxu0 %v43
    %102 = vmatprep.subr.mxu0 0.0
    %103 = vmatpush1.msra.mxu0 %v44
    %104 = vmatprep.subr.mxu0 0.0
    %105 = vmatpush1.msra.mxu0 %v45
    %106 = vmatprep.subr.mxu0 0.0
    %107 = vmatpush1.msra.mxu0 %v46
    %108 = vmatprep.subr.mxu0 0.0
    %109 = vmatpush1.msra.mxu0 %v47
    %110 = vmatprep.subr.mxu0 0.0
    %111 = vmatpush1.msra.mxu0 %v48
    %112 = vmatprep.subr.mxu0 0.0
    %113 = vmatpush1.msra.mxu0 %v49
    %114 = vmatprep.subr.mxu0 0.0
    %115 = vmatpush1.msra.mxu0 %v50
    %116 = vmatprep.subr.mxu0 0.0
    %117 = vmatpush1.msra.mxu0 %v51
    %118 = vmatprep.subr.mxu0 0.0
    %119 = vmatpush1.msra.mxu0 %v52
    %120 = vmatprep.subr.mxu0 0.0
    %121 = vmatpush1.msra.mxu0 %v53
    %122 = vmatprep.subr.mxu0 0.0
    %123 = vmatpush1.msra.mxu0 %v54
    %124 = vmatprep.subr.mxu0 0.0
    %125 = vmatpush1.msra.mxu0 %v55
    %126 = vmatprep.subr.mxu0 0.0
    %127 = vmatpush1.msra.mxu0 %v56
    %128 = vmatprep.mubr.f32.mxu0 %v22
    %129 = vmatmul.mubr.f32.gmra.mrb[0].mxu0 %v21
    %v130 = vpop.f32.mrb[0].mxu0
    %v131 = vadd.f32 %v62, %v130
    %v132 = vpop.f32.mrb[0].mxu0
    %133 = vmatprep.mubr.f32.mxu0 %v24
    %134 = vmatmul.mubr.f32.gmra.mrb[0].mxu0 %v23
    %v135 = vpop.f32.mrb[0].mxu0
    %v136 = vadd.f32 %v62, %v135
    %v137 = vpop.f32.mrb[0].mxu0
    %138 = vdwg.mxu0
    %v139 = vmax.f32 %v131, 0.0
    %v140 = vmax.f32 %v136, 0.0
    %v141 = vld [vmem:[%s3] sm:$0xff]
    %v142 = vld [vmem:[%s3 + $0x8] sm:$0xff]
    %v143 = vld [vmem:[%s3 + $0x10] sm:$0xff]
    %v144 = vld [vmem:[%s3 + $0x18] sm:$0xff]
    %v145 = vld [vmem:[%s4] sm:$0x3]
    %v147 = vlaneseq
    %v148 = vshrl.u32 %v147, 7
    %v149 = vsub.s32 0, %v148
    %v150 = vrot.slane %v145, %v149
    %v151 = vlaneseq
    %v152 = vshrl.u32 %v151, 7
    %v153 = vsub.s32 1, %v152
    %v154 = vrot.slane %v145, %v153
    %vm157 = vcmask 130048
    %v159 = vsel %vm157, %v139, 0
    %v162 = vsel %vm157, %v140, 0
    %164 = vmatprep.subr.mxu0 %v142
    %165 = vmatpush1.msra.mxu0 %v141
    %166 = vmatprep.subr.mxu0 %v144
    %167 = vmatpush1.msra.mxu0 %v143
    %168 = vmatprep.subr.mxu0 0.0
    %169 = vmatpush1.msra.mxu0 0.0
    %170 = vmatprep.subr.mxu0 0.0
    %171 = vmatpush1.msra.mxu0 0.0
    %172 = vmatprep.subr.mxu0 0.0
    %173 = vmatpush1.msra.mxu0 0.0
    %174 = vmatprep.subr.mxu0 0.0
    %175 = vmatpush1.msra.mxu0 0.0
    %176 = vmatprep.subr.mxu0 0.0
    %177 = vmatpush1.msra.mxu0 0.0
    %178 = vmatprep.subr.mxu0 0.0
    %179 = vmatpush1.msra.mxu0 0.0
    %180 = vmatprep.subr.mxu0 0.0
    %181 = vmatpush1.msra.mxu0 0.0
    %182 = vmatprep.subr.mxu0 0.0
    %183 = vmatpush1.msra.mxu0 0.0
    %184 = vmatprep.subr.mxu0 0.0
    %185 = vmatpush1.msra.mxu0 0.0
    %186 = vmatprep.subr.mxu0 0.0
    %187 = vmatpush1.msra.mxu0 0.0
    %188 = vmatprep.subr.mxu0 0.0
    %189 = vmatpush1.msra.mxu0 0.0
    %190 = vmatprep.subr.mxu0 0.0
    %191 = vmatpush1.msra.mxu0 0.0
    %192 = vmatprep.subr.mxu0 0.0
    %193 = vmatpush1.msra.mxu0 0.0
    %194 = vmatprep.subr.mxu0 0.0
    %195 = vmatpush1.msra.mxu0 0.0
    %196 = vmatprep.subr.mxu0 0.0
    %197 = vmatpush1.msra.mxu0 0.0
    %198 = vmatprep.subr.mxu0 0.0
    %199 = vmatpush1.msra.mxu0 0.0
    %200 = vmatprep.subr.mxu0 0.0
    %201 = vmatpush1.msra.mxu0 0.0
    %202 = vmatprep.subr.mxu0 0.0
    %203 = vmatpush1.msra.mxu0 0.0
    %204 = vmatprep.subr.mxu0 0.0
    %205 = vmatpush1.msra.mxu0 0.0
    %206 = vmatprep.subr.mxu0 0.0
    %207 = vmatpush1.msra.mxu0 0.0
    %208 = vmatprep.subr.mxu0 0.0
    %209 = vmatpush1.msra.mxu0 0.0
    %210 = vmatprep.subr.mxu0 0.0
    %211 = vmatpush1.msra.mxu0 0.0
    %212 = vmatprep.subr.mxu0 0.0
    %213 = vmatpush1.msra.mxu0 0.0
    %214 = vmatprep.subr.mxu0 0.0
    %215 = vmatpush1.msra.mxu0 0.0
    %216 = vmatprep.subr.mxu0 0.0
    %217 = vmatpush1.msra.mxu0 0.0
    %218 = vmatprep.subr.mxu0 0.0
    %219 = vmatpush1.msra.mxu0 0.0
    %220 = vmatprep.subr.mxu0 0.0
    %221 = vmatpush1.msra.mxu0 0.0
    %222 = vmatprep.subr.mxu0 0.0
    %223 = vmatpush1.msra.mxu0 0.0
    %224 = vmatprep.subr.mxu0 0.0
    %225 = vmatpush1.msra.mxu0 0.0
    %226 = vmatprep.subr.mxu0 0.0
    %227 = vmatpush1.msra.mxu0 0.0
    %228 = vmatprep.mubr.f32.mxu0 0.0
    %229 = vmatmul.mubr.f32.gmra.mrb[0].mxu0 %v159
    %v230 = vpop.f32.mrb[0].mxu0
    %v231 = vadd.f32 %v150, %v230
    %v232 = vpop.f32.mrb[0].mxu0
    %v233 = vadd.f32 %v154, %v232
    %234 = vmatprep.mubr.f32.mxu0 0.0
    %235 = vmatmul.mubr.f32.gmra.mrb[0].mxu0 %v162
    %v236 = vpop.f32.mrb[0].mxu0
    %v237 = vadd.f32 %v150, %v236
    %v238 = vpop.f32.mrb[0].mxu0
    %v239 = vadd.f32 %v154, %v238
    %240 = vdwg.mxu0
    %v241 = vsub.f32 0.0, %v231
    %v242 = vsub.f32 0.0, %v233
    %v243 = vsub.f32 0.0, %v237
    %v244 = vsub.f32 0.0, %v239
    %v245 = vmul.f32 %v241, 1.442695
    %v246 = vpow.pop %v245
    %v247 = vmul.f32 %v242, 1.442695
    %v248 = vpow.pop %v247
    %v249 = vmul.f32 %v243, 1.442695
    %v250 = vpow.pop %v249
    %v251 = vmul.f32 %v244, 1.442695
    %v252 = vpow.pop %v251
    %v253 = vadd.f32 %v246, 1.0
    %v254 = vadd.f32 %v248, 1.0
    %v255 = vadd.f32 %v250, 1.0
    %v256 = vadd.f32 %v252, 1.0
    %v257 = vrcp.pop %v253
    %v258 = vrcp.pop %v254
    %v259 = vrcp.pop %v255
    %v260 = vrcp.pop %v256
    %v261 = vmul.f32 %v21, %v257
    %v262 = vmul.f32 %v22, %v258
    %v263 = vmul.f32 %v23, %v259
    %v264 = vmul.f32 %v24, %v260
    %265 = vst [vmem:[#allocation2] sm:$0xff] %v261
    %266 = vst [vmem:[#allocation2 + $0x8] sm:$0xff] %v262
    %267 = vst [vmem:[#allocation2 + $0x10] sm:$0xff] %v263
    %268 = vst [vmem:[#allocation2 + $0x18] sm:$0xff] %v264
    // Predicated region
    $region22: #{tpu_custom_call.1} parent=1 // pred_check
      _
    $region23: #{tpu_custom_call.1} parent=1 // pred_check_branch
      %270 = sbr.rel (0) target = $region25
    $region24: #{tpu_custom_call.1} parent=1 // pred_region
      %s272 = ssub.s32 512, 256
      %273 = vsyncadd [#allocation3], %s272
      %s274 = sshll.u32 [#allocation2], 4
      %s275 = int_to_ptr.vmem [resolvable:$true] %s274
      %280 = dma.vmem_to_hbm [thread:$0]  %s275, 256, %s5, [#allocation3], 256, 256, 16
    $region25: #{tpu_custom_call.1} parent=1 // pred_fallthru
      _
    // Predicated region
    $region26: #{tpu_custom_call.1} parent=1 // pred_check
      _
    $region27: #{tpu_custom_call.1} parent=1 // pred_check_branch
      %282 = sbr.rel (0) target = $region29
    $region28: #{tpu_custom_call.1} parent=1 // pred_region
      %283 = dma.done [#allocation3], 512
    $region29: #{tpu_custom_call.1} parent=1 // pred_fallthru
      _
    %284 = vsyncpa [#allocation3], 1

</llo_original>
